<compile_context>
chip_gen: v7x
topology: tpu7x:2x2x1
jax: 0.10.0
libtpu: 0.0.40
codegen_flags: <defaults>
</compile_context>

<pallas_src>
import jax
import jax.numpy as jnp
from jax.experimental import pallas as pl
from jax.experimental.pallas import tpu as pltpu


# ----------------------------------------------------------------------------
# Fused kernel: embedding gather + all LSTM layers + decoder in one program.
# ----------------------------------------------------------------------------
def _lstmnn_kernel(ids_ref, emb_ref, h0_ref, c0_ref, wih_ref, whh_ref, b_ref,
                   wdec_ref, bdec_ref, hc_ref, y_ref):
    n_layer, batch, H = h0_ref.shape
    nchars = emb_ref.shape[0]
    wdt = emb_ref.dtype          # weight streaming dtype (bf16); acc stays f32

    # Embedding lookup as a one-hot matmul (no dynamic indexing needed).
    # Exact even with bf16 weights: one-hot entries are 0/1.
    ids = ids_ref[...]                                            # (batch, 1) i32
    cols = jax.lax.broadcasted_iota(jnp.int32, (batch, nchars), 1)
    onehot = (cols == ids).astype(wdt)                            # (batch, nchars)
    x = jnp.dot(onehot, emb_ref[...],
                preferred_element_type=jnp.float32)               # (batch, H) f32

    # Layers unrolled in one program (n_layer is a small static constant).
    for l in range(n_layer):
        h_prev = h0_ref[l]                                        # (batch, H) f32
        c_prev = c0_ref[l]

        # Two matmuls, bf16 operands, f32 accumulation.
        gates = (jnp.dot(x.astype(wdt), wih_ref[l],
                         preferred_element_type=jnp.float32)
                 + jnp.dot(h_prev.astype(wdt), whh_ref[l],
                           preferred_element_type=jnp.float32)
                 + b_ref[l])                                      # (batch, 4H) f32

        # Gate columns were host-repacked as [i | f | o | g]:
        # sigmoid over the first 3H columns, tanh only over the last H.
        sig = jax.nn.sigmoid(gates[:, :3 * H])
        g_g = jnp.tanh(gates[:, 3 * H:])
        i_g = sig[:, 0 * H:1 * H]
        f_g = sig[:, 1 * H:2 * H]
        o_g = sig[:, 2 * H:3 * H]

        c_new = f_g * c_prev + i_g * g_g
        h_new = o_g * jnp.tanh(c_new)

        # Fused lane-dense [h | c] store (one 2H-wide store per layer).
        hc_ref[l] = jnp.concatenate([h_new, c_new], axis=-1).astype(hc_ref.dtype)
        x = h_new                     # feeds the next layer (stays in vregs)

    # Decoder (Linear): y = h_last @ W_dec^T + b_dec (W_dec pre-transposed).
    y_ref[...] = (jnp.dot(x.astype(wdt), wdec_ref[...],
                          preferred_element_type=jnp.float32)
                  + bdec_ref[...]).astype(y_ref.dtype)


def lstmnn_fused_pallas(ids2d, emb, h0, c0, wih_t, whh_t, b, w_dec_t, b_dec):
    n_layer, batch, H = h0.shape
    nchars = emb.shape[0]
    vmem = lambda: pl.BlockSpec(memory_space=pltpu.MemorySpace.VMEM)
    return pl.pallas_call(
        _lstmnn_kernel,
        out_shape=(jax.ShapeDtypeStruct((n_layer, batch, 2 * H), jnp.float32),
                   jax.ShapeDtypeStruct((batch, nchars), jnp.float32)),
        in_specs=[vmem() for _ in range(9)],
        out_specs=(vmem(), vmem()),
    )(ids2d, emb, h0, c0, wih_t, whh_t, b, w_dec_t, b_dec)


# ----------------------------------------------------------------------------
# Full forward pass (mirrors LSTMNN.forward)
# ----------------------------------------------------------------------------
@jax.jit
def lstmnn_forward(kparams, inp, hidden):
    h0, c0 = hidden
    batch = inp.shape[0]
    H = h0.shape[-1]
    ids2d = inp.reshape(batch, 1).astype(jnp.int32)
    hc, y = lstmnn_fused_pallas(
        ids2d, kparams["emb"], h0, c0,
        kparams["wih_t"], kparams["whh_t"], kparams["b"],
        kparams["w_dec_t"], kparams["b_dec"])
    h_n = hc[:, :, :H]
    c_n = hc[:, :, H:]
    return y, (h_n, c_n)


# ----------------------------------------------------------------------------
# Parameter construction
# ----------------------------------------------------------------------------
def init_params(key, nchars, hid_s, n_layer):
    """PyTorch-layout parameters (nn.Embedding / nn.LSTM / nn.Linear)."""
    ks = jax.random.split(key, 7)
    s = 1.0 / float(hid_s) ** 0.5
    emb = jax.random.normal(ks[0], (nchars, hid_s), jnp.float32)
    w_ih = jax.random.uniform(ks[1], (n_layer, 4 * hid_s, hid_s), jnp.float32, -s, s)
    w_hh = jax.random.uniform(ks[2], (n_layer, 4 * hid_s, hid_s), jnp.float32, -s, s)
    b_ih = jax.random.uniform(ks[3], (n_layer, 4 * hid_s), jnp.float32, -s, s)
    b_hh = jax.random.uniform(ks[4], (n_layer, 4 * hid_s), jnp.float32, -s, s)
    w_dec = jax.random.uniform(ks[5], (nchars, hid_s), jnp.float32, -s, s)
    b_dec = jax.random.uniform(ks[6], (nchars,), jnp.float32, -s, s)
    return dict(emb=emb, w_ih=w_ih, w_hh=w_hh, b_ih=b_ih, b_hh=b_hh,
                w_dec=w_dec, b_dec=b_dec)


def _reorder_gates(a):
    """Reorder the trailing 4H gate axis from PyTorch [i,f,g,o] to [i,f,o,g]."""
    i, f, g, o = jnp.split(a, 4, axis=-1)
    return jnp.concatenate([i, f, o, g], axis=-1)


def pack_params(p, weight_dtype=jnp.bfloat16):
    """Kernel layout: pre-transposed bf16 weights, [i|f|o|g] gate columns,
    pre-summed f32 bias."""
    wih_t = _reorder_gates(jnp.transpose(p["w_ih"], (0, 2, 1)))   # (L, H, 4H)
    whh_t = _reorder_gates(jnp.transpose(p["w_hh"], (0, 2, 1)))   # (L, H, 4H)
    b = _reorder_gates(p["b_ih"] + p["b_hh"])[:, None, :]         # (L, 1, 4H) f32
    return dict(
        emb=p["emb"].astype(weight_dtype),                        # (nchars, H)
        wih_t=wih_t.astype(weight_dtype),
        whh_t=whh_t.astype(weight_dtype),
        b=b,
        w_dec_t=p["w_dec"].T.astype(weight_dtype),                # (H, nchars)
        b_dec=p["b_dec"][None, :],                                # (1, nchars) f32
    )


# ----------------------------------------------------------------------------
# Pure-JAX reference (PyTorch layout). quantize=True mimics the kernel's bf16
# weight/activation-at-matmul streaming for a tight correctness check.
# ----------------------------------------------------------------------------
def ref_forward(p, inp, hidden, n_layer, quantize=False):
    if quantize:
        q = lambda a: a.astype(jnp.bfloat16).astype(jnp.float32)
    else:
        q = lambda a: a
    x = q(p["emb"])[inp]
    h0, c0 = hidden
    hs, cs = [], []
    for l in range(n_layer):
        gates = (q(x) @ q(p["w_ih"][l].T) + q(h0[l]) @ q(p["w_hh"][l].T)
                 + p["b_ih"][l] + p["b_hh"][l])
        i_g, f_g, g_g, o_g = jnp.split(gates, 4, axis=-1)
        i_g, f_g, o_g = (jax.nn.sigmoid(i_g), jax.nn.sigmoid(f_g),
                         jax.nn.sigmoid(o_g))
        g_g = jnp.tanh(g_g)
        c = f_g * c0[l] + i_g * g_g
        h = o_g * jnp.tanh(c)
        hs.append(h)
        cs.append(c)
        x = h
    y = q(x) @ q(p["w_dec"].T) + p["b_dec"][None, :]
    return y, (jnp.stack(hs), jnp.stack(cs))


if __name__ == "__main__":
    nchars, hid_s, n_layer, batch = 64, 32, 2, 8

    key = jax.random.PRNGKey(0)
    pkey, ikey, hkey, ckey = jax.random.split(key, 4)
    torch_params = init_params(pkey, nchars, hid_s, n_layer)
    kparams = pack_params(torch_params)

    inp = jax.random.randint(ikey, (batch,), 0, nchars, dtype=jnp.int32)
    # Nonzero hidden state exercises the recurrent (W_hh) path; init_hidden's
    # zeros are a special case of the same signature.
    h0 = 0.1 * jax.random.normal(hkey, (n_layer, batch, hid_s), jnp.float32)
    c0 = 0.1 * jax.random.normal(ckey, (n_layer, batch, hid_s), jnp.float32)

    y, (h_n, c_n) = lstmnn_forward(kparams, inp, (h0, c0))
    jax.block_until_ready((y, h_n, c_n))

    assert y.shape == (batch, nchars)
    assert h_n.shape == (n_layer, batch, hid_s) and c_n.shape == h_n.shape

    # Tight check against a reference using the same bf16-quantized weights
    # (validates the kernel math itself).
    y_q, (h_q, c_q) = ref_forward(torch_params, inp, (h0, c0), n_layer,
                                  quantize=True)
    assert jnp.allclose(y, y_q, atol=2e-3, rtol=2e-3)
    assert jnp.allclose(h_n, h_q, atol=2e-3, rtol=2e-3)
    assert jnp.allclose(c_n, c_q, atol=2e-3, rtol=2e-3)

    # Looser check against the pure-f32 PyTorch-layout reference (semantics
    # preserved under bf16 weight streaming).
    y_r, (h_r, c_r) = ref_forward(torch_params, inp, (h0, c0), n_layer,
                                  quantize=False)
    assert jnp.allclose(y, y_r, atol=2e-2, rtol=2e-2)
    assert jnp.allclose(h_n, h_r, atol=2e-2, rtol=2e-2)
    assert jnp.allclose(c_n, c_r, atol=2e-2, rtol=2e-2)

    print("KERNEL_OK")
</pallas_src>

<mosaic_0001>
module attributes {stable_mosaic.version = 11 : i64} {
  func.func @_lstmnn_kernel(%arg0: memref<8x1xi32, #tpu.memory_space<vmem>>, %arg1: memref<64x32xbf16, #tpu.memory_space<vmem>>, %arg2: memref<2x8x32xf32, #tpu.memory_space<vmem>>, %arg3: memref<2x8x32xf32, #tpu.memory_space<vmem>>, %arg4: memref<2x32x128xbf16, #tpu.memory_space<vmem>>, %arg5: memref<2x32x128xbf16, #tpu.memory_space<vmem>>, %arg6: memref<2x1x128xf32, #tpu.memory_space<vmem>>, %arg7: memref<32x64xbf16, #tpu.memory_space<vmem>>, %arg8: memref<1x64xf32, #tpu.memory_space<vmem>>, %arg9: memref<2x8x64xf32, #tpu.memory_space<vmem>>, %arg10: memref<8x64xf32, #tpu.memory_space<vmem>>) attributes {dimension_semantics = [], scalar_prefetch = 0 : i64, scratch_operands = 0 : i64, tpu.core_type = #tpu.core_type<tc>} {
    %c0 = arith.constant 0 : index
    %c0_0 = arith.constant 0 : index
    %0 = vector.load %arg0[%c0, %c0_0] : memref<8x1xi32, #tpu.memory_space<vmem>>, vector<8x1xi32>
    %1 = tpu.iota {dimensions = array<i32: 1>} : vector<8x64xi32>
    %2 = vector.broadcast %0 : vector<8x1xi32> to vector<8x64xi32>
    %3 = arith.cmpi eq, %1, %2 : vector<8x64xi32>
    %4 = arith.extui %3 : vector<8x64xi1> to vector<8x64xi32>
    %5 = arith.sitofp %4 : vector<8x64xi32> to vector<8x64xf32>
    %6 = arith.truncf %5 : vector<8x64xf32> to vector<8x64xbf16>
    %c0_1 = arith.constant 0 : index
    %c0_2 = arith.constant 0 : index
    %7 = vector.load %arg1[%c0_1, %c0_2] : memref<64x32xbf16, #tpu.memory_space<vmem>>, vector<64x32xbf16>
    %cst = arith.constant dense<0.000000e+00> : vector<8x32xf32>
    %8 = tpu.matmul %6, %7, %cst {dimension_numbers = #tpu.dot_dimension_numbers<[1], [0], [0], [1], [0, 0, 1, 1], [], []>} : vector<8x64xbf16>, vector<64x32xbf16>, vector<8x32xf32> -> vector<8x32xf32>
    %c0_3 = arith.constant 0 : index
    %c0_4 = arith.constant 0 : index
    %c0_5 = arith.constant 0 : index
    %9 = vector.load %arg2[%c0_3, %c0_4, %c0_5] : memref<2x8x32xf32, #tpu.memory_space<vmem>>, vector<1x8x32xf32>
    %10 = vector.shape_cast %9 : vector<1x8x32xf32> to vector<8x32xf32>
    %c0_6 = arith.constant 0 : index
    %c0_7 = arith.constant 0 : index
    %c0_8 = arith.constant 0 : index
    %11 = vector.load %arg3[%c0_6, %c0_7, %c0_8] : memref<2x8x32xf32, #tpu.memory_space<vmem>>, vector<1x8x32xf32>
    %12 = vector.shape_cast %11 : vector<1x8x32xf32> to vector<8x32xf32>
    %13 = arith.truncf %8 : vector<8x32xf32> to vector<8x32xbf16>
    %c0_9 = arith.constant 0 : index
    %c0_10 = arith.constant 0 : index
    %c0_11 = arith.constant 0 : index
    %14 = vector.load %arg4[%c0_9, %c0_10, %c0_11] : memref<2x32x128xbf16, #tpu.memory_space<vmem>>, vector<1x32x128xbf16>
    %15 = vector.shape_cast %14 : vector<1x32x128xbf16> to vector<32x128xbf16>
    %cst_12 = arith.constant dense<0.000000e+00> : vector<8x128xf32>
    %16 = tpu.matmul %13, %15, %cst_12 {dimension_numbers = #tpu.dot_dimension_numbers<[1], [0], [0], [1], [0, 0, 1, 1], [], []>} : vector<8x32xbf16>, vector<32x128xbf16>, vector<8x128xf32> -> vector<8x128xf32>
    %17 = arith.truncf %10 : vector<8x32xf32> to vector<8x32xbf16>
    %c0_13 = arith.constant 0 : index
    %c0_14 = arith.constant 0 : index
    %c0_15 = arith.constant 0 : index
    %18 = vector.load %arg5[%c0_13, %c0_14, %c0_15] : memref<2x32x128xbf16, #tpu.memory_space<vmem>>, vector<1x32x128xbf16>
    %19 = vector.shape_cast %18 : vector<1x32x128xbf16> to vector<32x128xbf16>
    %cst_16 = arith.constant dense<0.000000e+00> : vector<8x128xf32>
    %20 = tpu.matmul %17, %19, %cst_16 {dimension_numbers = #tpu.dot_dimension_numbers<[1], [0], [0], [1], [0, 0, 1, 1], [], []>} : vector<8x32xbf16>, vector<32x128xbf16>, vector<8x128xf32> -> vector<8x128xf32>
    %21 = arith.addf %16, %20 : vector<8x128xf32>
    %c0_17 = arith.constant 0 : index
    %c0_18 = arith.constant 0 : index
    %c0_19 = arith.constant 0 : index
    %22 = vector.load %arg6[%c0_17, %c0_18, %c0_19] : memref<2x1x128xf32, #tpu.memory_space<vmem>>, vector<1x1x128xf32>
    %23 = vector.shape_cast %22 : vector<1x1x128xf32> to vector<1x128xf32>
    %24 = vector.broadcast %23 : vector<1x128xf32> to vector<8x128xf32>
    %25 = arith.addf %21, %24 : vector<8x128xf32>
    %26 = vector.extract_strided_slice %25 {offsets = [0, 0], sizes = [8, 96], strides = [1, 1]} : vector<8x128xf32> to vector<8x96xf32>
    %27 = arith.negf %26 : vector<8x96xf32>
    %28 = math.exp %27 : vector<8x96xf32>
    %cst_20 = arith.constant 1.000000e+00 : f32
    %29 = vector.broadcast %cst_20 : f32 to vector<8x96xf32>
    %30 = arith.addf %29, %28 : vector<8x96xf32>
    %31 = arith.divf %29, %30 : vector<8x96xf32>
    %32 = vector.extract_strided_slice %25 {offsets = [0, 96], sizes = [8, 32], strides = [1, 1]} : vector<8x128xf32> to vector<8x32xf32>
    %33 = math.tanh %32 : vector<8x32xf32>
    %34 = vector.extract_strided_slice %31 {offsets = [0, 0], sizes = [8, 32], strides = [1, 1]} : vector<8x96xf32> to vector<8x32xf32>
    %35 = vector.extract_strided_slice %31 {offsets = [0, 32], sizes = [8, 32], strides = [1, 1]} : vector<8x96xf32> to vector<8x32xf32>
    %36 = vector.extract_strided_slice %31 {offsets = [0, 64], sizes = [8, 32], strides = [1, 1]} : vector<8x96xf32> to vector<8x32xf32>
    %37 = arith.mulf %35, %12 : vector<8x32xf32>
    %38 = arith.mulf %34, %33 : vector<8x32xf32>
    %39 = arith.addf %37, %38 : vector<8x32xf32>
    %40 = math.tanh %39 : vector<8x32xf32>
    %41 = arith.mulf %36, %40 : vector<8x32xf32>
    %42 = tpu.concatenate %41, %39 in 1 : vector<8x32xf32>, vector<8x32xf32> -> vector<8x64xf32>
    %c0_21 = arith.constant 0 : index
    %c0_22 = arith.constant 0 : index
    %c0_23 = arith.constant 0 : index
    %43 = vector.load %arg9[%c0_21, %c0_22, %c0_23] : memref<2x8x64xf32, #tpu.memory_space<vmem>>, vector<1x8x64xf32>
    %44 = vector.shape_cast %43 : vector<1x8x64xf32> to vector<8x64xf32>
    %45 = vector.shape_cast %42 : vector<8x64xf32> to vector<1x8x64xf32>
    tpu.vector_store %arg9[%c0_21, %c0_22, %c0_23], %45 {strides = array<i32>} : memref<2x8x64xf32, #tpu.memory_space<vmem>>, vector<1x8x64xf32>,
    %c1 = arith.constant 1 : index
    %c0_24 = arith.constant 0 : index
    %c0_25 = arith.constant 0 : index
    %46 = vector.load %arg2[%c1, %c0_24, %c0_25] : memref<2x8x32xf32, #tpu.memory_space<vmem>>, vector<1x8x32xf32>
    %47 = vector.shape_cast %46 : vector<1x8x32xf32> to vector<8x32xf32>
    %c1_26 = arith.constant 1 : index
    %c0_27 = arith.constant 0 : index
    %c0_28 = arith.constant 0 : index
    %48 = vector.load %arg3[%c1_26, %c0_27, %c0_28] : memref<2x8x32xf32, #tpu.memory_space<vmem>>, vector<1x8x32xf32>
    %49 = vector.shape_cast %48 : vector<1x8x32xf32> to vector<8x32xf32>
    %50 = arith.truncf %41 : vector<8x32xf32> to vector<8x32xbf16>
    %c1_29 = arith.constant 1 : index
    %c0_30 = arith.constant 0 : index
    %c0_31 = arith.constant 0 : index
    %51 = vector.load %arg4[%c1_29, %c0_30, %c0_31] : memref<2x32x128xbf16, #tpu.memory_space<vmem>>, vector<1x32x128xbf16>
    %52 = vector.shape_cast %51 : vector<1x32x128xbf16> to vector<32x128xbf16>
    %cst_32 = arith.constant dense<0.000000e+00> : vector<8x128xf32>
    %53 = tpu.matmul %50, %52, %cst_32 {dimension_numbers = #tpu.dot_dimension_numbers<[1], [0], [0], [1], [0, 0, 1, 1], [], []>} : vector<8x32xbf16>, vector<32x128xbf16>, vector<8x128xf32> -> vector<8x128xf32>
    %54 = arith.truncf %47 : vector<8x32xf32> to vector<8x32xbf16>
    %c1_33 = arith.constant 1 : index
    %c0_34 = arith.constant 0 : index
    %c0_35 = arith.constant 0 : index
    %55 = vector.load %arg5[%c1_33, %c0_34, %c0_35] : memref<2x32x128xbf16, #tpu.memory_space<vmem>>, vector<1x32x128xbf16>
    %56 = vector.shape_cast %55 : vector<1x32x128xbf16> to vector<32x128xbf16>
    %cst_36 = arith.constant dense<0.000000e+00> : vector<8x128xf32>
    %57 = tpu.matmul %54, %56, %cst_36 {dimension_numbers = #tpu.dot_dimension_numbers<[1], [0], [0], [1], [0, 0, 1, 1], [], []>} : vector<8x32xbf16>, vector<32x128xbf16>, vector<8x128xf32> -> vector<8x128xf32>
    %58 = arith.addf %53, %57 : vector<8x128xf32>
    %c1_37 = arith.constant 1 : index
    %c0_38 = arith.constant 0 : index
    %c0_39 = arith.constant 0 : index
    %59 = vector.load %arg6[%c1_37, %c0_38, %c0_39] : memref<2x1x128xf32, #tpu.memory_space<vmem>>, vector<1x1x128xf32>
    %60 = vector.shape_cast %59 : vector<1x1x128xf32> to vector<1x128xf32>
    %61 = vector.broadcast %60 : vector<1x128xf32> to vector<8x128xf32>
    %62 = arith.addf %58, %61 : vector<8x128xf32>
    %63 = vector.extract_strided_slice %62 {offsets = [0, 0], sizes = [8, 96], strides = [1, 1]} : vector<8x128xf32> to vector<8x96xf32>
    %64 = arith.negf %63 : vector<8x96xf32>
    %65 = math.exp %64 : vector<8x96xf32>
    %cst_40 = arith.constant 1.000000e+00 : f32
    %66 = vector.broadcast %cst_40 : f32 to vector<8x96xf32>
    %67 = arith.addf %66, %65 : vector<8x96xf32>
    %68 = arith.divf %66, %67 : vector<8x96xf32>
    %69 = vector.extract_strided_slice %62 {offsets = [0, 96], sizes = [8, 32], strides = [1, 1]} : vector<8x128xf32> to vector<8x32xf32>
    %70 = math.tanh %69 : vector<8x32xf32>
    %71 = vector.extract_strided_slice %68 {offsets = [0, 0], sizes = [8, 32], strides = [1, 1]} : vector<8x96xf32> to vector<8x32xf32>
    %72 = vector.extract_strided_slice %68 {offsets = [0, 32], sizes = [8, 32], strides = [1, 1]} : vector<8x96xf32> to vector<8x32xf32>
    %73 = vector.extract_strided_slice %68 {offsets = [0, 64], sizes = [8, 32], strides = [1, 1]} : vector<8x96xf32> to vector<8x32xf32>
    %74 = arith.mulf %72, %49 : vector<8x32xf32>
    %75 = arith.mulf %71, %70 : vector<8x32xf32>
    %76 = arith.addf %74, %75 : vector<8x32xf32>
    %77 = math.tanh %76 : vector<8x32xf32>
    %78 = arith.mulf %73, %77 : vector<8x32xf32>
    %79 = tpu.concatenate %78, %76 in 1 : vector<8x32xf32>, vector<8x32xf32> -> vector<8x64xf32>
    %c1_41 = arith.constant 1 : index
    %c0_42 = arith.constant 0 : index
    %c0_43 = arith.constant 0 : index
    %80 = vector.load %arg9[%c1_41, %c0_42, %c0_43] : memref<2x8x64xf32, #tpu.memory_space<vmem>>, vector<1x8x64xf32>
    %81 = vector.shape_cast %80 : vector<1x8x64xf32> to vector<8x64xf32>
    %82 = vector.shape_cast %79 : vector<8x64xf32> to vector<1x8x64xf32>
    tpu.vector_store %arg9[%c1_41, %c0_42, %c0_43], %82 {strides = array<i32>} : memref<2x8x64xf32, #tpu.memory_space<vmem>>, vector<1x8x64xf32>,
    %83 = arith.truncf %78 : vector<8x32xf32> to vector<8x32xbf16>
    %c0_44 = arith.constant 0 : index
    %c0_45 = arith.constant 0 : index
    %84 = vector.load %arg7[%c0_44, %c0_45] : memref<32x64xbf16, #tpu.memory_space<vmem>>, vector<32x64xbf16>
    %cst_46 = arith.constant dense<0.000000e+00> : vector<8x64xf32>
    %85 = tpu.matmul %83, %84, %cst_46 {dimension_numbers = #tpu.dot_dimension_numbers<[1], [0], [0], [1], [0, 0, 1, 1], [], []>} : vector<8x32xbf16>, vector<32x64xbf16>, vector<8x64xf32> -> vector<8x64xf32>
    %c0_47 = arith.constant 0 : index
    %c0_48 = arith.constant 0 : index
    %86 = vector.load %arg8[%c0_47, %c0_48] : memref<1x64xf32, #tpu.memory_space<vmem>>, vector<1x64xf32>
    %87 = vector.broadcast %86 : vector<1x64xf32> to vector<8x64xf32>
    %88 = arith.addf %85, %87 : vector<8x64xf32>
    %c0_49 = arith.constant 0 : index
    %c0_50 = arith.constant 0 : index
    %89 = vector.load %arg10[%c0_49, %c0_50] : memref<8x64xf32, #tpu.memory_space<vmem>>, vector<8x64xf32>
    tpu.vector_store %arg10[%c0_49, %c0_50], %88 {strides = array<i32>} : memref<8x64xf32, #tpu.memory_space<vmem>>, vector<8x64xf32>,
    return
  }
}

</mosaic_0001>

<llo_original>
// kernel: lstmnn_forward.1
$region0: #{lstmnn_forward.1}
  #allocation0 [shape = 'u32[]', space=smem, size = 0x4, offset = 0x4, fixed_abs, tag = 'smem constant byte address 0x4 - core index']
  #allocation1 [shape = 'u32[144,128]{1,0:T(1,128)}', space=vmem, size = 0x12000, scoped, tag = 'internal scratch']
  %s0 = inlined_call_operand.vmem [shape: s32[8,1], index: 0, kind: input, shape index: {}]
  %s1 = inlined_call_operand.vmem [shape: bf16[64,32], index: 1, kind: input, shape index: {}]
  %s2 = inlined_call_operand.vmem [shape: f32[2,8,32], index: 2, kind: input, shape index: {}]
  %s3 = inlined_call_operand.hbm [shape: f32[2,8,32], index: 3, kind: input, shape index: {}]
  %s4 = inlined_call_operand.vmem [shape: bf16[2,32,128], index: 4, kind: input, shape index: {}]
  %s5 = inlined_call_operand.vmem [shape: bf16[2,32,128], index: 5, kind: input, shape index: {}]
  %s6 = inlined_call_operand.hbm [shape: f32[2,1,128], index: 6, kind: input, shape index: {}]
  %s7 = inlined_call_operand.hbm [shape: bf16[32,64], index: 7, kind: input, shape index: {}]
  %s8 = inlined_call_operand.hbm [shape: f32[1,64], index: 8, kind: input, shape index: {}]
  %s9 = inlined_call_operand.vmem [shape: f32[2,8,64], index: 9, kind: output, shape index: {0}]
  %s10 = inlined_call_operand.hbm [shape: f32[8,64], index: 10, kind: output, shape index: {1}]
  %11 = xla_tuple %s9, %s10
  %s12 = sld [smem:[#allocation0]]
  $region70: #{lstmnn_forward.1} parent=0
    _
  %s14 = ssub.s32 1, %s12
  %s15 = scalar_select 0, %s14, %s12
  $region1: #{lstmnn_forward.1} parent=0
    #allocation2 [shape = 'u8[8192]{0}', space=vmem, size = 0x2000, scoped, tag = 'input window, operand 3, single buffered']
    #allocation3 [shape = 's32[1]{0}', space=sflag, size = 0x4, scoped, tag = 'scoped memory for lstmnn_forward.1']
    #allocation4 [shape = 's32[1]{0}', space=sflag, size = 0x4, scoped, tag = 'scoped memory for lstmnn_forward.1']
    #allocation5 [shape = 'u8[1024]{0}', space=vmem, size = 0x400, scoped, tag = 'input window, operand 6, single buffered']
    #allocation6 [shape = 's32[1]{0}', space=sflag, size = 0x4, scoped, tag = 'scoped memory for lstmnn_forward.1']
    #allocation7 [shape = 'u8[8192]{0}', space=vmem, size = 0x2000, scoped, tag = 'input window, operand 7, single buffered']
    #allocation8 [shape = 'u8[512]{0}', space=vmem, size = 0x400, scoped, tag = 'input window, operand 8, single buffered']
    #allocation9 [shape = 's32[1]{0}', space=sflag, size = 0x4, scoped, tag = 'scoped memory for lstmnn_forward.1']
    #allocation10 [shape = 'u8[4096]{0}', space=vmem, size = 0x1000, scoped, tag = 'output window, operand 1, single buffered']
    %16 = vsyncpa [#allocation3], 0
    %17 = vsyncpa [#allocation6], 0
    %18 = vsyncpa [#allocation9], 0
    %19 = vsyncpa [#allocation4], 0
    // Predicated region
    $region2: #{lstmnn_forward.1} parent=1 // pred_check
      _
    $region3: #{lstmnn_forward.1} parent=1 // pred_check_branch
      %21 = sbr.rel (0) target = $region5
    $region4: #{lstmnn_forward.1} parent=1 // pred_region
      _
    $region5: #{lstmnn_forward.1} parent=1 // pred_fallthru
      _
    // Predicated region
    $region6: #{lstmnn_forward.1} parent=1 // pred_check
      _
    $region7: #{lstmnn_forward.1} parent=1 // pred_check_branch
      %23 = sbr.rel (0) target = $region9
    $region8: #{lstmnn_forward.1} parent=1 // pred_region
      _
    $region9: #{lstmnn_forward.1} parent=1 // pred_fallthru
      _
    // Predicated region
    $region10: #{lstmnn_forward.1} parent=1 // pred_check
      _
    $region11: #{lstmnn_forward.1} parent=1 // pred_check_branch
      %25 = sbr.rel (0) target = $region13
    $region12: #{lstmnn_forward.1} parent=1 // pred_region
      _
    $region13: #{lstmnn_forward.1} parent=1 // pred_fallthru
      _
    // Predicated region
    $region14: #{lstmnn_forward.1} parent=1 // pred_check
      _
    $region15: #{lstmnn_forward.1} parent=1 // pred_check_branch
      %27 = sbr.rel (0) target = $region17
    $region16: #{lstmnn_forward.1} parent=1 // pred_region
      %s29 = ssub.s32 256, 256
      %30 = vsyncadd [#allocation3], %s29
      %s31 = sshll.u32 [#allocation2], 4
      %s32 = int_to_ptr.vmem [resolvable:$true] %s31
      %37 = dma.hbm_to_vmem [thread:$0]  %s3, 256, %s32, [#allocation3], 128, 128, 8
    $region17: #{lstmnn_forward.1} parent=1 // pred_fallthru
      _
    // Predicated region
    $region18: #{lstmnn_forward.1} parent=1 // pred_check
      _
    $region19: #{lstmnn_forward.1} parent=1 // pred_check_branch
      %39 = sbr.rel (0) target = $region21
    $region20: #{lstmnn_forward.1} parent=1 // pred_region
      _
    $region21: #{lstmnn_forward.1} parent=1 // pred_fallthru
      _
    // Predicated region
    $region22: #{lstmnn_forward.1} parent=1 // pred_check
      _
    $region23: #{lstmnn_forward.1} parent=1 // pred_check_branch
      %41 = sbr.rel (0) target = $region25
    $region24: #{lstmnn_forward.1} parent=1 // pred_region
      _
    $region25: #{lstmnn_forward.1} parent=1 // pred_fallthru
      _
    // Predicated region
    $region26: #{lstmnn_forward.1} parent=1 // pred_check
      _
    $region27: #{lstmnn_forward.1} parent=1 // pred_check_branch
      %43 = sbr.rel (0) target = $region29
    $region28: #{lstmnn_forward.1} parent=1 // pred_region
      %s45 = ssub.s32 32, 32
      %46 = vsyncadd [#allocation6], %s45
      %s47 = sshll.u32 [#allocation5], 4
      %s48 = int_to_ptr.vmem [resolvable:$true] %s47
      %53 = dma.hbm_to_vmem [thread:$0]  %s6, 32, %s48, [#allocation6], 16, 16, 1
    $region29: #{lstmnn_forward.1} parent=1 // pred_fallthru
      _
    // Predicated region
    $region30: #{lstmnn_forward.1} parent=1 // pred_check
      _
    $region31: #{lstmnn_forward.1} parent=1 // pred_check_branch
      %55 = sbr.rel (0) target = $region33
    $region32: #{lstmnn_forward.1} parent=1 // pred_region
      %s57 = ssub.s32 256, 256
      %58 = vsyncadd [#allocation6], %s57
      %s59 = sshll.u32 [#allocation7], 4
      %s60 = int_to_ptr.vmem [resolvable:$true] %s59
      %65 = dma.hbm_to_vmem [thread:$0]  %s7, 256, %s60, [#allocation6], 64, 64, 4
    $region33: #{lstmnn_forward.1} parent=1 // pred_fallthru
      _
    // Predicated region
    $region34: #{lstmnn_forward.1} parent=1 // pred_check
      _
    $region35: #{lstmnn_forward.1} parent=1 // pred_check_branch
      %67 = sbr.rel (0) target = $region37
    $region36: #{lstmnn_forward.1} parent=1 // pred_region
      %s69 = ssub.s32 16, 16
      %70 = vsyncadd [#allocation9], %s69
      %s72 = sshll.u32 [#allocation8], 4
      %s73 = int_to_ptr.vmem [resolvable:$true] %s72
      %75 = dma.hbm_to_vmem [thread:$0]  %s8, 16, %s73, [#allocation9]
    $region37: #{lstmnn_forward.1} parent=1 // pred_fallthru
      _
    // Predicated region
    $region38: #{lstmnn_forward.1} parent=1 // pred_check
      _
    $region39: #{lstmnn_forward.1} parent=1 // pred_check_branch
      %77 = sbr.rel (0) target = $region41
    $region40: #{lstmnn_forward.1} parent=1 // pred_region
      %78 = dma.done [#allocation3], 256
    $region41: #{lstmnn_forward.1} parent=1 // pred_fallthru
      _
    // Predicated region
    $region42: #{lstmnn_forward.1} parent=1 // pred_check
      _
    $region43: #{lstmnn_forward.1} parent=1 // pred_check_branch
      %80 = sbr.rel (0) target = $region45
    $region44: #{lstmnn_forward.1} parent=1 // pred_region
      %81 = dma.done [#allocation6], 32
    $region45: #{lstmnn_forward.1} parent=1 // pred_fallthru
      _
    // Predicated region
    $region46: #{lstmnn_forward.1} parent=1 // pred_check
      _
    $region47: #{lstmnn_forward.1} parent=1 // pred_check_branch
      %83 = sbr.rel (0) target = $region49
    $region48: #{lstmnn_forward.1} parent=1 // pred_region
      %84 = dma.done [#allocation6], 256
    $region49: #{lstmnn_forward.1} parent=1 // pred_fallthru
      _
    // Predicated region
    $region50: #{lstmnn_forward.1} parent=1 // pred_check
      _
    $region51: #{lstmnn_forward.1} parent=1 // pred_check_branch
      %86 = sbr.rel (0) target = $region53
    $region52: #{lstmnn_forward.1} parent=1 // pred_region
      %87 = dma.done [#allocation9], 16
    $region53: #{lstmnn_forward.1} parent=1 // pred_fallthru
      _
    %v89 = vld [vmem:[%s0] sm:$0xff]
    %v90 = vlaneseq
    %v91 = vand.u32 %v90, 127
    %92 = vset.pattern.permute.xlu0 0
    %93 = vperm.xlu0 %92, %v89
    %v94 = vpop.permute.xlu0 %93
    %vm95 = vcmp.eq.s32.totalorder %v91, %v94
    %v96 = vsel %vm95, 1, 0
    %v97 = vcvt.s32.f32 %v96
    %v98 = vpack.c.bf16 %v97, %v97
    %v99 = vld [vmem:[%s1] sm:$0xf]
    %v100 = vld [vmem:[%s1 + $0x4] sm:$0xf]
    %v101 = vld [vmem:[%s1 + $0x8] sm:$0xf]
    %v102 = vld [vmem:[%s1 + $0xc] sm:$0xf]
    %v103 = vld [vmem:[%s1 + $0x10] sm:$0xf]
    %v104 = vld [vmem:[%s1 + $0x14] sm:$0xf]
    %v105 = vld [vmem:[%s1 + $0x18] sm:$0xf]
    %v106 = vld [vmem:[%s1 + $0x1c] sm:$0xf]
    %v115 = vunpack.c.l.b16 %v99
    %v116 = vunpack.c.l.b16 %v100
    %v117 = vunpack.c.l.b16 %v101
    %v118 = vunpack.c.l.b16 %v102
    %v119 = vunpack.c.l.b16 %v103
    %v120 = vunpack.c.l.b16 %v104
    %v121 = vunpack.c.l.b16 %v105
    %v122 = vunpack.c.l.b16 %v106
    %v123 = vpack.c.b16 %v116, %v115
    %v124 = vpack.c.b16 %v118, %v117
    %v125 = vpack.c.b16 %v120, %v119
    %v126 = vpack.c.b16 %v122, %v121
    %vm131 = vcmask 523264
    %v133 = vsel %vm131, %v98, 0
    %135 = vmatprep.subr.bf16.mxu0 0
    %136 = vmatpush1.bf16.msra.mxu0 %v123
    %137 = vmatprep.subr.bf16.mxu0 0
    %138 = vmatpush1.bf16.msra.mxu0 %v124
    %139 = vmatprep.subr.bf16.mxu0 0
    %140 = vmatpush1.bf16.msra.mxu0 %v125
    %141 = vmatprep.subr.bf16.mxu0 0
    %142 = vmatpush1.bf16.msra.mxu0 %v126
    %143 = vmatprep.subr.bf16.mxu0 0
    %144 = vmatpush1.bf16.msra.mxu0 0
    %145 = vmatprep.subr.bf16.mxu0 0
    %146 = vmatpush1.bf16.msra.mxu0 0
    %147 = vmatprep.subr.bf16.mxu0 0
    %148 = vmatpush1.bf16.msra.mxu0 0
    %149 = vmatprep.subr.bf16.mxu0 0
    %150 = vmatpush1.bf16.msra.mxu0 0
    %151 = vmatprep.subr.bf16.mxu0 0
    %152 = vmatpush1.bf16.msra.mxu0 0
    %153 = vmatprep.subr.bf16.mxu0 0
    %154 = vmatpush1.bf16.msra.mxu0 0
    %155 = vmatprep.subr.bf16.mxu0 0
    %156 = vmatpush1.bf16.msra.mxu0 0
    %157 = vmatprep.subr.bf16.mxu0 0
    %158 = vmatpush1.bf16.msra.mxu0 0
    %159 = vmatprep.subr.bf16.mxu0 0
    %160 = vmatpush1.bf16.msra.mxu0 0
    %161 = vmatprep.subr.bf16.mxu0 0
    %162 = vmatpush1.bf16.msra.mxu0 0
    %163 = vmatprep.subr.bf16.mxu0 0
    %164 = vmatpush1.bf16.msra.mxu0 0
    %165 = vmatprep.subr.bf16.mxu0 0
    %166 = vmatpush1.bf16.msra.mxu0 0
    %167 = vmatprep.mubr.bf16.mxu0 0
    %168 = vmatmul.mubr.bf16.gmra.mrb[0].mxu0 %v133
    %v169 = vpop.f32.mrb[0].mxu0
    %v170 = vadd.f32 0.0, %v169
    %v171 = vpop.f32.mrb[0].mxu0
    %v172 = vpop.f32.mrb[0].mxu0
    %v173 = vpop.f32.mrb[0].mxu0
    %174 = vdwg.mxu0
    %v175 = vld [vmem:[%s2] sm:$0xff]
    %v176 = vld [vmem:[#allocation2] sm:$0xff]
    %v177 = vpack.c.bf16 %v170, %v170
    %v178 = vld [vmem:[%s4] sm:$0xf]
    %v179 = vld [vmem:[%s4 + $0x4] sm:$0xf]
    %v180 = vld [vmem:[%s4 + $0x8] sm:$0xf]
    %v181 = vld [vmem:[%s4 + $0xc] sm:$0xf]
    %v182 = vpack.c.bf16 %v175, %v175
    %v183 = vld [vmem:[%s5] sm:$0xf]
    %v184 = vld [vmem:[%s5 + $0x4] sm:$0xf]
    %v185 = vld [vmem:[%s5 + $0x8] sm:$0xf]
    %v186 = vld [vmem:[%s5 + $0xc] sm:$0xf]
    %v191 = vunpack.c.l.b16 %v183
    %v192 = vunpack.c.l.b16 %v184
    %v193 = vunpack.c.l.b16 %v185
    %v194 = vunpack.c.l.b16 %v186
    %v195 = vpack.c.b16 %v192, %v191
    %v196 = vpack.c.b16 %v194, %v193
    %vm199 = vcmask 261120
    %v201 = vsel %vm199, %v182, 0
    %203 = vmatprep.subr.bf16.mxu0 0
    %204 = vmatpush1.bf16.msra.mxu0 %v195
    %205 = vmatprep.subr.bf16.mxu0 0
    %206 = vmatpush1.bf16.msra.mxu0 %v196
    %207 = vmatprep.subr.bf16.mxu0 0
    %208 = vmatpush1.bf16.msra.mxu0 0
    %209 = vmatprep.subr.bf16.mxu0 0
    %210 = vmatpush1.bf16.msra.mxu0 0
    %211 = vmatprep.subr.bf16.mxu0 0
    %212 = vmatpush1.bf16.msra.mxu0 0
    %213 = vmatprep.subr.bf16.mxu0 0
    %214 = vmatpush1.bf16.msra.mxu0 0
    %215 = vmatprep.subr.bf16.mxu0 0
    %216 = vmatpush1.bf16.msra.mxu0 0
    %217 = vmatprep.subr.bf16.mxu0 0
    %218 = vmatpush1.bf16.msra.mxu0 0
    %219 = vmatprep.subr.bf16.mxu0 0
    %220 = vmatpush1.bf16.msra.mxu0 0
    %221 = vmatprep.subr.bf16.mxu0 0
    %222 = vmatpush1.bf16.msra.mxu0 0
    %223 = vmatprep.subr.bf16.mxu0 0
    %224 = vmatpush1.bf16.msra.mxu0 0
    %225 = vmatprep.subr.bf16.mxu0 0
    %226 = vmatpush1.bf16.msra.mxu0 0
    %227 = vmatprep.subr.bf16.mxu0 0
    %228 = vmatpush1.bf16.msra.mxu0 0
    %229 = vmatprep.subr.bf16.mxu0 0
    %230 = vmatpush1.bf16.msra.mxu0 0
    %231 = vmatprep.subr.bf16.mxu0 0
    %232 = vmatpush1.bf16.msra.mxu0 0
    %233 = vmatprep.subr.bf16.mxu0 0
    %234 = vmatpush1.bf16.msra.mxu0 0
    %235 = vmatprep.mubr.bf16.mxu0 0
    %236 = vmatmul.mubr.bf16.gmra.mrb[0].mxu0 %v201
    %v237 = vpop.f32.mrb[0].mxu0
    %v238 = vadd.f32 0.0, %v237
    %v239 = vpop.f32.mrb[0].mxu0
    %v240 = vpop.f32.mrb[0].mxu0
    %v241 = vpop.f32.mrb[0].mxu0
    %242 = vdwg.mxu0
    %v247 = vunpack.c.l.b16 %v178
    %v248 = vunpack.c.l.b16 %v179
    %v249 = vunpack.c.l.b16 %v180
    %v250 = vunpack.c.l.b16 %v181
    %v251 = vpack.c.b16 %v248, %v247
    %v252 = vpack.c.b16 %v250, %v249
    %v256 = vsel %vm199, %v177, 0
    %258 = vmatprep.subr.bf16.mxu0 0
    %259 = vmatpush1.bf16.msra.mxu0 %v251
    %260 = vmatprep.subr.bf16.mxu0 0
    %261 = vmatpush1.bf16.msra.mxu0 %v252
    %262 = vmatprep.subr.bf16.mxu0 0
    %263 = vmatpush1.bf16.msra.mxu0 0
    %264 = vmatprep.subr.bf16.mxu0 0
    %265 = vmatpush1.bf16.msra.mxu0 0
    %266 = vmatprep.subr.bf16.mxu0 0
    %267 = vmatpush1.bf16.msra.mxu0 0
    %268 = vmatprep.subr.bf16.mxu0 0
    %269 = vmatpush1.bf16.msra.mxu0 0
    %270 = vmatprep.subr.bf16.mxu0 0
    %271 = vmatpush1.bf16.msra.mxu0 0
    %272 = vmatprep.subr.bf16.mxu0 0
    %273 = vmatpush1.bf16.msra.mxu0 0
    %274 = vmatprep.subr.bf16.mxu0 0
    %275 = vmatpush1.bf16.msra.mxu0 0
    %276 = vmatprep.subr.bf16.mxu0 0
    %277 = vmatpush1.bf16.msra.mxu0 0
    %278 = vmatprep.subr.bf16.mxu0 0
    %279 = vmatpush1.bf16.msra.mxu0 0
    %280 = vmatprep.subr.bf16.mxu0 0
    %281 = vmatpush1.bf16.msra.mxu0 0
    %282 = vmatprep.subr.bf16.mxu0 0
    %283 = vmatpush1.bf16.msra.mxu0 0
    %284 = vmatprep.subr.bf16.mxu0 0
    %285 = vmatpush1.bf16.msra.mxu0 0
    %286 = vmatprep.subr.bf16.mxu0 0
    %287 = vmatpush1.bf16.msra.mxu0 0
    %288 = vmatprep.subr.bf16.mxu0 0
    %289 = vmatpush1.bf16.msra.mxu0 0
    %290 = vmatprep.mubr.bf16.mxu0 0
    %291 = vmatmul.mubr.bf16.gmra.mrb[0].mxu0 %v256
    %v292 = vpop.f32.mrb[0].mxu0
    %v293 = vadd.f32 %v238, %v292
    %v294 = vpop.f32.mrb[0].mxu0
    %v295 = vpop.f32.mrb[0].mxu0
    %v296 = vpop.f32.mrb[0].mxu0
    %297 = vdwg.mxu0
    %v298 = vld [vmem:[#allocation5] sm:$0x1]
    %v300 = vlaneseq
    %v301 = vshrl.u32 %v300, 7
    %v302 = vsub.s32 0, %v301
    %v303 = vrot.slane %v298, %v302
    %v305 = vadd.f32 %v293, %v303
    %v306 = vxor.u32 %v305, 2147483648
    %v307 = vmul.f32 %v306, 1.442695
    %v308 = vpow.pop %v307
    %v309 = vadd.f32 %v308, 1.0
    %v310 = vrcp.pop %v309
    %v311 = vmul.f32 1.0, %v310
    %v312 = vtanh.pop %v305
    %314 = vrot.lane.b32.xlu0 %v176, 32
    %v315 = vpop.permute.xlu0 %314
    %v317 = vmul.f32 %v311, %v315
    %319 = vrot.lane.b32.xlu0 %v312, 32
    %v320 = vpop.permute.xlu0 %319
    %v322 = vmul.f32 %v311, %v320
    %324 = vrot.lane.b32.xlu0 %v322, 32
    %v325 = vpop.permute.xlu0 %324
    %v327 = vadd.f32 %v317, %v325
    %v328 = vtanh.pop %v327
    %330 = vrot.lane.b32.xlu0 %v328, 32
    %v331 = vpop.permute.xlu0 %330
    %v333 = vmul.f32 %v311, %v331
    %335 = vrot.lane.b32.xlu0 %v333, 64
    %v336 = vpop.permute.xlu0 %335
    %v338 = vsel %vm199, %v336, %v327
    %339 = vst.msk [vmem:[%s9] sm:$0xff] %vm131, %v338
    %s340 = scalar_lea.vmem %s2, 8
    %v341 = vld [vmem:[%s340] sm:$0xff]
    %s342 = scalar_lea.vmem [#allocation2], 8
    %v343 = vld [vmem:[%s342] sm:$0xff]
    %v344 = vpack.c.bf16 %v333, %v333
    %s345 = scalar_lea.vmem %s4, 16
    %v346 = vld [vmem:[%s345] sm:$0xf]
    %v347 = vld [vmem:[%s345 + $0x4] sm:$0xf]
    %v348 = vld [vmem:[%s345 + $0x8] sm:$0xf]
    %v349 = vld [vmem:[%s345 + $0xc] sm:$0xf]
    %v350 = vpack.c.bf16 %v341, %v341
    %s351 = scalar_lea.vmem %s5, 16
    %v352 = vld [vmem:[%s351] sm:$0xf]
    %v353 = vld [vmem:[%s351 + $0x4] sm:$0xf]
    %v354 = vld [vmem:[%s351 + $0x8] sm:$0xf]
    %v355 = vld [vmem:[%s351 + $0xc] sm:$0xf]
    %v360 = vunpack.c.l.b16 %v352
    %v361 = vunpack.c.l.b16 %v353
    %v362 = vunpack.c.l.b16 %v354
    %v363 = vunpack.c.l.b16 %v355
    %v364 = vpack.c.b16 %v361, %v360
    %v365 = vpack.c.b16 %v363, %v362
    %v369 = vsel %vm199, %v350, 0
    %371 = vmatprep.subr.bf16.mxu0 0
    %372 = vmatpush1.bf16.msra.mxu0 %v364
    %373 = vmatprep.subr.bf16.mxu0 0
    %374 = vmatpush1.bf16.msra.mxu0 %v365
    %375 = vmatprep.subr.bf16.mxu0 0
    %376 = vmatpush1.bf16.msra.mxu0 0
    %377 = vmatprep.subr.bf16.mxu0 0
    %378 = vmatpush1.bf16.msra.mxu0 0
    %379 = vmatprep.subr.bf16.mxu0 0
    %380 = vmatpush1.bf16.msra.mxu0 0
    %381 = vmatprep.subr.bf16.mxu0 0
    %382 = vmatpush1.bf16.msra.mxu0 0
    %383 = vmatprep.subr.bf16.mxu0 0
    %384 = vmatpush1.bf16.msra.mxu0 0
    %385 = vmatprep.subr.bf16.mxu0 0
    %386 = vmatpush1.bf16.msra.mxu0 0
    %387 = vmatprep.subr.bf16.mxu0 0
    %388 = vmatpush1.bf16.msra.mxu0 0
    %389 = vmatprep.subr.bf16.mxu0 0
    %390 = vmatpush1.bf16.msra.mxu0 0
    %391 = vmatprep.subr.bf16.mxu0 0
    %392 = vmatpush1.bf16.msra.mxu0 0
    %393 = vmatprep.subr.bf16.mxu0 0
    %394 = vmatpush1.bf16.msra.mxu0 0
    %395 = vmatprep.subr.bf16.mxu0 0
    %396 = vmatpush1.bf16.msra.mxu0 0
    %397 = vmatprep.subr.bf16.mxu0 0
    %398 = vmatpush1.bf16.msra.mxu0 0
    %399 = vmatprep.subr.bf16.mxu0 0
    %400 = vmatpush1.bf16.msra.mxu0 0
    %401 = vmatprep.subr.bf16.mxu0 0
    %402 = vmatpush1.bf16.msra.mxu0 0
    %403 = vmatprep.mubr.bf16.mxu0 0
    %404 = vmatmul.mubr.bf16.gmra.mrb[0].mxu0 %v369
    %v405 = vpop.f32.mrb[0].mxu0
    %v406 = vadd.f32 0.0, %v405
    %v407 = vpop.f32.mrb[0].mxu0
    %v408 = vpop.f32.mrb[0].mxu0
    %v409 = vpop.f32.mrb[0].mxu0
    %410 = vdwg.mxu0
    %412 = vrot.lane.b32.xlu0 %v344, 64
    %v413 = vpop.permute.xlu0 %412
    %v418 = vunpack.c.l.b16 %v346
    %v419 = vunpack.c.l.b16 %v347
    %v420 = vunpack.c.l.b16 %v348
    %v421 = vunpack.c.l.b16 %v349
    %v422 = vpack.c.b16 %v419, %v418
    %v423 = vpack.c.b16 %v421, %v420
    %v427 = vsel %vm199, %v413, 0
    %429 = vmatprep.subr.bf16.mxu0 0
    %430 = vmatpush1.bf16.msra.mxu0 %v422
    %431 = vmatprep.subr.bf16.mxu0 0
    %432 = vmatpush1.bf16.msra.mxu0 %v423
    %433 = vmatprep.subr.bf16.mxu0 0
    %434 = vmatpush1.bf16.msra.mxu0 0
    %435 = vmatprep.subr.bf16.mxu0 0
    %436 = vmatpush1.bf16.msra.mxu0 0
    %437 = vmatprep.subr.bf16.mxu0 0
    %438 = vmatpush1.bf16.msra.mxu0 0
    %439 = vmatprep.subr.bf16.mxu0 0
    %440 = vmatpush1.bf16.msra.mxu0 0
    %441 = vmatprep.subr.bf16.mxu0 0
    %442 = vmatpush1.bf16.msra.mxu0 0
    %443 = vmatprep.subr.bf16.mxu0 0
    %444 = vmatpush1.bf16.msra.mxu0 0
    %445 = vmatprep.subr.bf16.mxu0 0
    %446 = vmatpush1.bf16.msra.mxu0 0
    %447 = vmatprep.subr.bf16.mxu0 0
    %448 = vmatpush1.bf16.msra.mxu0 0
    %449 = vmatprep.subr.bf16.mxu0 0
    %450 = vmatpush1.bf16.msra.mxu0 0
    %451 = vmatprep.subr.bf16.mxu0 0
    %452 = vmatpush1.bf16.msra.mxu0 0
    %453 = vmatprep.subr.bf16.mxu0 0
    %454 = vmatpush1.bf16.msra.mxu0 0
    %455 = vmatprep.subr.bf16.mxu0 0
    %456 = vmatpush1.bf16.msra.mxu0 0
    %457 = vmatprep.subr.bf16.mxu0 0
    %458 = vmatpush1.bf16.msra.mxu0 0
    %459 = vmatprep.subr.bf16.mxu0 0
    %460 = vmatpush1.bf16.msra.mxu0 0
    %461 = vmatprep.mubr.bf16.mxu0 0
    %462 = vmatmul.mubr.bf16.gmra.mrb[0].mxu0 %v427
    %v463 = vpop.f32.mrb[0].mxu0
    %v464 = vadd.f32 %v406, %v463
    %v465 = vpop.f32.mrb[0].mxu0
    %v466 = vpop.f32.mrb[0].mxu0
    %v467 = vpop.f32.mrb[0].mxu0
    %468 = vdwg.mxu0
    %s469 = scalar_lea.vmem [#allocation5], 1
    %v470 = vld [vmem:[%s469] sm:$0x1]
    %v472 = vlaneseq
    %v473 = vshrl.u32 %v472, 7
    %v474 = vsub.s32 0, %v473
    %v475 = vrot.slane %v470, %v474
    %v477 = vadd.f32 %v464, %v475
    %v478 = vxor.u32 %v477, 2147483648
    %v479 = vmul.f32 %v478, 1.442695
    %v480 = vpow.pop %v479
    %v481 = vadd.f32 %v480, 1.0
    %v482 = vrcp.pop %v481
    %v483 = vmul.f32 1.0, %v482
    %v484 = vtanh.pop %v477
    %486 = vrot.lane.b32.xlu0 %v343, 32
    %v487 = vpop.permute.xlu0 %486
    %v489 = vmul.f32 %v483, %v487
    %491 = vrot.lane.b32.xlu0 %v484, 32
    %v492 = vpop.permute.xlu0 %491
    %v494 = vmul.f32 %v483, %v492
    %496 = vrot.lane.b32.xlu0 %v494, 32
    %v497 = vpop.permute.xlu0 %496
    %v499 = vadd.f32 %v489, %v497
    %v500 = vtanh.pop %v499
    %502 = vrot.lane.b32.xlu0 %v500, 32
    %v503 = vpop.permute.xlu0 %502
    %v505 = vmul.f32 %v483, %v503
    %507 = vrot.lane.b32.xlu0 %v505, 64
    %v508 = vpop.permute.xlu0 %507
    %v510 = vsel %vm199, %v508, %v499
    %s511 = scalar_lea.vmem %s9, 8
    %512 = vst.msk [vmem:[%s511] sm:$0xff] %vm131, %v510
    %v513 = vpack.c.bf16 %v505, %v505
    %v514 = vld [vmem:[#allocation7] sm:$0xf]
    %v515 = vld [vmem:[#allocation7 + $0x4] sm:$0xf]
    %v516 = vld [vmem:[#allocation7 + $0x8] sm:$0xf]
    %v517 = vld [vmem:[#allocation7 + $0xc] sm:$0xf]
    %v518 = vld [vmem:[#allocation8] sm:$0x1]
    %v520 = vlaneseq
    %v521 = vshrl.u32 %v520, 7
    %v522 = vsub.s32 0, %v521
    %v523 = vrot.slane %v518, %v522
    %526 = vrot.lane.b32.xlu0 %v513, 64
    %v527 = vpop.permute.xlu0 %526
    %v532 = vunpack.c.l.b16 %v514
    %v533 = vunpack.c.l.b16 %v515
    %v534 = vunpack.c.l.b16 %v516
    %v535 = vunpack.c.l.b16 %v517
    %v536 = vpack.c.b16 %v533, %v532
    %v537 = vpack.c.b16 %v535, %v534
    %v541 = vsel %vm199, %v527, 0
    %543 = vmatprep.subr.bf16.mxu0 0
    %544 = vmatpush1.bf16.msra.mxu0 %v536
    %545 = vmatprep.subr.bf16.mxu0 0
    %546 = vmatpush1.bf16.msra.mxu0 %v537
    %547 = vmatprep.subr.bf16.mxu0 0
    %548 = vmatpush1.bf16.msra.mxu0 0
    %549 = vmatprep.subr.bf16.mxu0 0
    %550 = vmatpush1.bf16.msra.mxu0 0
    %551 = vmatprep.subr.bf16.mxu0 0
    %552 = vmatpush1.bf16.msra.mxu0 0
    %553 = vmatprep.subr.bf16.mxu0 0
    %554 = vmatpush1.bf16.msra.mxu0 0
    %555 = vmatprep.subr.bf16.mxu0 0
    %556 = vmatpush1.bf16.msra.mxu0 0
    %557 = vmatprep.subr.bf16.mxu0 0
    %558 = vmatpush1.bf16.msra.mxu0 0
    %559 = vmatprep.subr.bf16.mxu0 0
    %560 = vmatpush1.bf16.msra.mxu0 0
    %561 = vmatprep.subr.bf16.mxu0 0
    %562 = vmatpush1.bf16.msra.mxu0 0
    %563 = vmatprep.subr.bf16.mxu0 0
    %564 = vmatpush1.bf16.msra.mxu0 0
    %565 = vmatprep.subr.bf16.mxu0 0
    %566 = vmatpush1.bf16.msra.mxu0 0
    %567 = vmatprep.subr.bf16.mxu0 0
    %568 = vmatpush1.bf16.msra.mxu0 0
    %569 = vmatprep.subr.bf16.mxu0 0
    %570 = vmatpush1.bf16.msra.mxu0 0
    %571 = vmatprep.subr.bf16.mxu0 0
    %572 = vmatpush1.bf16.msra.mxu0 0
    %573 = vmatprep.subr.bf16.mxu0 0
    %574 = vmatpush1.bf16.msra.mxu0 0
    %575 = vmatprep.mubr.bf16.mxu0 0
    %576 = vmatmul.mubr.bf16.gmra.mrb[0].mxu0 %v541
    %v577 = vpop.f32.mrb[0].mxu0
    %v578 = vadd.f32 %v523, %v577
    %v579 = vpop.f32.mrb[0].mxu0
    %v580 = vpop.f32.mrb[0].mxu0
    %v581 = vpop.f32.mrb[0].mxu0
    %582 = vdwg.mxu0
    %583 = vst.msk [vmem:[#allocation10] sm:$0xff] %vm131, %v578
    // Predicated region
    $region54: #{lstmnn_forward.1} parent=1 // pred_check
      _
    $region55: #{lstmnn_forward.1} parent=1 // pred_check_branch
      %585 = sbr.rel (0) target = $region57
    $region56: #{lstmnn_forward.1} parent=1 // pred_region
      _
    $region57: #{lstmnn_forward.1} parent=1 // pred_fallthru
      _
    // Predicated region
    $region58: #{lstmnn_forward.1} parent=1 // pred_check
      _
    $region59: #{lstmnn_forward.1} parent=1 // pred_check_branch
      %587 = sbr.rel (0) target = $region61
    $region60: #{lstmnn_forward.1} parent=1 // pred_region
      %s589 = ssub.s32 128, 128
      %590 = vsyncadd [#allocation4], %s589
      %s592 = sshll.u32 [#allocation10], 4
      %s593 = int_to_ptr.vmem [resolvable:$true] %s592
      %595 = dma.vmem_to_hbm [thread:$0]  %s593, 128, %s10, [#allocation4]
    $region61: #{lstmnn_forward.1} parent=1 // pred_fallthru
      _
    // Predicated region
    $region62: #{lstmnn_forward.1} parent=1 // pred_check
      _
    $region63: #{lstmnn_forward.1} parent=1 // pred_check_branch
      %597 = sbr.rel (0) target = $region65
    $region64: #{lstmnn_forward.1} parent=1 // pred_region
      _
    $region65: #{lstmnn_forward.1} parent=1 // pred_fallthru
      _
    // Predicated region
    $region66: #{lstmnn_forward.1} parent=1 // pred_check
      _
    $region67: #{lstmnn_forward.1} parent=1 // pred_check_branch
      %599 = sbr.rel (0) target = $region69
    $region68: #{lstmnn_forward.1} parent=1 // pred_region
      %600 = dma.done [#allocation4], 128
    $region69: #{lstmnn_forward.1} parent=1 // pred_fallthru
      _
    %601 = vsyncpa [#allocation3], 1
    %602 = vsyncpa [#allocation6], 1
    %603 = vsyncpa [#allocation9], 1
    %604 = vsyncpa [#allocation4], 1

</llo_original>
